<compile_context>
chip_gen: v5e
topology: v5e:2x2
jax: 0.10.0
libtpu: 0.0.40
codegen_flags: <defaults>
</compile_context>

<pallas_src>
import functools

import numpy as np
import jax
import jax.numpy as jnp
from jax.experimental import pallas as pl
from jax.experimental.pallas import tpu as pltpu


def _adaptive_pool_matrix(in_size: int, out_size: int) -> np.ndarray:
    """Row i averages input indices [floor(i*in/out), ceil((i+1)*in/out)) —
    exactly PyTorch's AdaptiveAvgPool indexing."""
    P = np.zeros((out_size, in_size), dtype=np.float32)
    for i in range(out_size):
        start = (i * in_size) // out_size
        end = -(-((i + 1) * in_size) // out_size)  # ceil
        P[i, start:end] = 1.0 / (end - start)
    return P


def _fused_matmul_pool_kernel(x_ref, y_ref, ph_ref, pwt_ref, o_ref):
    # One grid step == one (b, c) pair.
    #   x_ref   : (1, M, K)  bf16   this step's lhs slab
    #   y_ref   : (K, N)     bf16   shared rhs
    #   ph_ref  : (OH, M)    bf16   row-pool matrix
    #   pwt_ref : (N, OW)    bf16   column-pool matrix, pre-transposed
    #   o_ref   : (1, OH, OW) f32
    x = x_ref[0]                                                    # (M, K)

    # yp depends only on (y, Pw), xh only on (Ph, x) -> independent MXU pushes;
    # the dependent chain is 2 matmuls instead of 3.
    yp = jnp.dot(y_ref[...], pwt_ref[...],
                 preferred_element_type=jnp.float32)                # (K, OW)
    xh = jnp.dot(ph_ref[...], x,
                 preferred_element_type=jnp.float32)                # (OH, K)

    # dropout: identity in eval mode.
    o_ref[0] = jnp.dot(xh.astype(jnp.bfloat16), yp.astype(jnp.bfloat16),
                       preferred_element_type=jnp.float32)          # (OH, OW)


@functools.partial(jax.jit, static_argnames=("out_size",))
def m_linear_forward(x, y, out_size=3):
    B, C, M, K = x.shape
    K2, N = y.shape
    assert K == K2
    BC = B * C
    OH = OW = out_size

    # Pool matrices depend only on static shapes -> built once at trace time,
    # embedded as constants, cached by jit across calls.
    ph = jnp.asarray(_adaptive_pool_matrix(M, OH), dtype=jnp.bfloat16)      # (OH, M)
    pw_t = jnp.asarray(_adaptive_pool_matrix(N, OW).T, dtype=jnp.bfloat16)  # (N, OW)

    # bf16 at the kernel boundary: MXU-native, halves input DMA bytes.
    x_bc = x.reshape(BC, M, K).astype(jnp.bfloat16)
    y_b = y.astype(jnp.bfloat16)

    out = pl.pallas_call(
        _fused_matmul_pool_kernel,
        out_shape=jax.ShapeDtypeStruct((BC, OH, OW), jnp.float32),
        grid=(BC,),  # one (b, c) per step; "parallel" -> shards across v7x's 2 TCs
        in_specs=[
            pl.BlockSpec((1, M, K), lambda i: (i, 0, 0)),
            pl.BlockSpec((K, N), lambda i: (0, 0)),      # constant index -> fetched once
            pl.BlockSpec((OH, M), lambda i: (0, 0)),
            pl.BlockSpec((N, OW), lambda i: (0, 0)),
        ],
        out_specs=pl.BlockSpec((1, OH, OW), lambda i: (i, 0, 0)),
        compiler_params=pltpu.CompilerParams(
            dimension_semantics=("parallel",)),
    )(x_bc, y_b, ph, pw_t)

    return out.reshape(B, C, OH, OW)


def reference_forward(x, y, out_size=3):
    """Pure-JAX f32 reference mirroring the PyTorch (eval-mode) semantics."""
    m = jnp.einsum("bcmk,kn->bcmn", x, y, precision=jax.lax.Precision.HIGHEST)
    ph = jnp.asarray(_adaptive_pool_matrix(m.shape[-2], out_size))
    pw = jnp.asarray(_adaptive_pool_matrix(m.shape[-1], out_size))
    return jnp.einsum("om,bcmn,pn->bcop", ph, m, pw,
                      precision=jax.lax.Precision.HIGHEST)


if __name__ == "__main__":
    key = jax.random.PRNGKey(0)
    kx, ky = jax.random.split(key, 2)

    # x (B, C, M, K=15), y (K=15, N): torch.matmul(x, y) is valid and the
    # 4-D (NCHW) result feeds AdaptiveAvgPool2d(3).
    B, C, M, K, N = 2, 4, 16, 15, 16
    x = jax.random.normal(kx, (B, C, M, K), jnp.float32)
    y = jax.random.normal(ky, (K, N), jnp.float32)

    out = m_linear_forward(x, y)
    out = jax.block_until_ready(out)

    ref = reference_forward(x, y)
    # bf16 inputs on the MXU (f32 accumulation) -> relaxed tolerance vs f32 ref.
    np.testing.assert_allclose(np.asarray(out), np.asarray(ref),
                               rtol=3e-2, atol=3e-2)
    assert out.shape == (B, C, 3, 3)

    print("KERNEL_OK")
</pallas_src>

<mosaic_0001>
module attributes {stable_mosaic.version = 11 : i64} {
  func.func @_fused_matmul_pool_kernel(%arg0: i32, %arg1: memref<1x16x15xbf16, #tpu.memory_space<vmem>>, %arg2: memref<15x16xbf16, #tpu.memory_space<vmem>>, %arg3: memref<3x16xbf16, #tpu.memory_space<vmem>>, %arg4: memref<16x3xbf16, #tpu.memory_space<vmem>>, %arg5: memref<1x3x3xf32, #tpu.memory_space<vmem>>) attributes {dimension_semantics = [#tpu.dimension_semantics<parallel>], iteration_bounds = array<i64: 8>, scalar_prefetch = 0 : i64, scratch_operands = 0 : i64, tpu.core_type = #tpu.core_type<tc>, window_params = [{transform_indices = @transform_0, window_bounds = array<i64: 1, 16, 15>}, {pipeline_mode = #tpu.pipeline_mode<synchronous>, transform_indices = @transform_1, window_bounds = array<i64: 15, 16>}, {pipeline_mode = #tpu.pipeline_mode<synchronous>, transform_indices = @transform_2, window_bounds = array<i64: 3, 16>}, {pipeline_mode = #tpu.pipeline_mode<synchronous>, transform_indices = @transform_3, window_bounds = array<i64: 16, 3>}, {transform_indices = @transform_4, window_bounds = array<i64: 1, 3, 3>}]} {
    %c0 = arith.constant 0 : index
    %c0_0 = arith.constant 0 : index
    %c0_1 = arith.constant 0 : index
    %0 = vector.load %arg1[%c0, %c0_0, %c0_1] : memref<1x16x15xbf16, #tpu.memory_space<vmem>>, vector<1x16x15xbf16>
    %1 = vector.shape_cast %0 : vector<1x16x15xbf16> to vector<16x15xbf16>
    %c0_2 = arith.constant 0 : index
    %c0_3 = arith.constant 0 : index
    %2 = vector.load %arg2[%c0_2, %c0_3] : memref<15x16xbf16, #tpu.memory_space<vmem>>, vector<15x16xbf16>
    %c0_4 = arith.constant 0 : index
    %c0_5 = arith.constant 0 : index
    %3 = vector.load %arg4[%c0_4, %c0_5] : memref<16x3xbf16, #tpu.memory_space<vmem>>, vector<16x3xbf16>
    %cst = arith.constant dense<0.000000e+00> : vector<15x3xf32>
    %4 = tpu.matmul %2, %3, %cst {dimension_numbers = #tpu.dot_dimension_numbers<[1], [0], [0], [1], [0, 0, 1, 1], [], []>} : vector<15x16xbf16>, vector<16x3xbf16>, vector<15x3xf32> -> vector<15x3xf32>
    %c0_6 = arith.constant 0 : index
    %c0_7 = arith.constant 0 : index
    %5 = vector.load %arg3[%c0_6, %c0_7] : memref<3x16xbf16, #tpu.memory_space<vmem>>, vector<3x16xbf16>
    %cst_8 = arith.constant dense<0.000000e+00> : vector<3x15xf32>
    %6 = tpu.matmul %5, %1, %cst_8 {dimension_numbers = #tpu.dot_dimension_numbers<[1], [0], [0], [1], [0, 0, 1, 1], [], []>} : vector<3x16xbf16>, vector<16x15xbf16>, vector<3x15xf32> -> vector<3x15xf32>
    %7 = arith.truncf %6 : vector<3x15xf32> to vector<3x15xbf16>
    %8 = arith.truncf %4 : vector<15x3xf32> to vector<15x3xbf16>
    %cst_9 = arith.constant dense<0.000000e+00> : vector<3x3xf32>
    %9 = tpu.matmul %7, %8, %cst_9 {dimension_numbers = #tpu.dot_dimension_numbers<[1], [0], [0], [1], [0, 0, 1, 1], [], []>} : vector<3x15xbf16>, vector<15x3xbf16>, vector<3x3xf32> -> vector<3x3xf32>
    %c0_10 = arith.constant 0 : index
    %c0_11 = arith.constant 0 : index
    %c0_12 = arith.constant 0 : index
    %10 = vector.load %arg5[%c0_10, %c0_11, %c0_12] : memref<1x3x3xf32, #tpu.memory_space<vmem>>, vector<1x3x3xf32>
    %11 = vector.shape_cast %10 : vector<1x3x3xf32> to vector<3x3xf32>
    %12 = vector.shape_cast %9 : vector<3x3xf32> to vector<1x3x3xf32>
    tpu.vector_store %arg5[%c0_10, %c0_11, %c0_12], %12 {strides = array<i32>} : memref<1x3x3xf32, #tpu.memory_space<vmem>>, vector<1x3x3xf32>,
    return
  }
  func.func @transform_0(%arg0: i32) -> (i32, i32, i32) {
    %c0_i32 = arith.constant 0 : i32
    %c0_i32_0 = arith.constant 0 : i32
    %c0_i32_1 = arith.constant 0 : i32
    return %arg0, %c0_i32, %c0_i32_0 : i32, i32, i32
  }
  func.func @transform_1(%arg0: i32) -> (i32, i32) {
    %c0_i32 = arith.constant 0 : i32
    %c0_i32_0 = arith.constant 0 : i32
    %c0_i32_1 = arith.constant 0 : i32
    return %c0_i32, %c0_i32_0 : i32, i32
  }
  func.func @transform_2(%arg0: i32) -> (i32, i32) {
    %c0_i32 = arith.constant 0 : i32
    %c0_i32_0 = arith.constant 0 : i32
    %c0_i32_1 = arith.constant 0 : i32
    return %c0_i32, %c0_i32_0 : i32, i32
  }
  func.func @transform_3(%arg0: i32) -> (i32, i32) {
    %c0_i32 = arith.constant 0 : i32
    %c0_i32_0 = arith.constant 0 : i32
    %c0_i32_1 = arith.constant 0 : i32
    return %c0_i32, %c0_i32_0 : i32, i32
  }
  func.func @transform_4(%arg0: i32) -> (i32, i32, i32) {
    %c0_i32 = arith.constant 0 : i32
    %c0_i32_0 = arith.constant 0 : i32
    %c0_i32_1 = arith.constant 0 : i32
    return %arg0, %c0_i32, %c0_i32_0 : i32, i32, i32
  }
}

</mosaic_0001>

<llo_original>
// kernel: m_linear_forward.1
$region0: #{m_linear_forward.1}
  #allocation0 [shape = 'u32[]', space=smem, size = 0x4, offset = 0x4, fixed_abs, tag = 'smem constant byte address 0x4 - core index']
  #allocation1 [shape = 'u32[72,128]{1,0:T(1,128)}', space=vmem, size = 0x9000, scoped, tag = 'internal scratch']
  %s0 = inlined_call_operand.vmem [shape: bf16[8,16,15], index: 0, kind: input, shape index: {}]
  %s1 = inlined_call_operand.vmem [shape: bf16[15,16], index: 1, kind: input, shape index: {}]
  %s2 = inlined_call_operand.vmem [shape: bf16[3,16], index: 2, kind: input, shape index: {}]
  %s3 = inlined_call_operand.vmem [shape: bf16[16,3], index: 3, kind: input, shape index: {}]
  %s4 = inlined_call_operand.vmem [shape: f32[8,3,3], index: 4, kind: output, shape index: {}]
  %s5 = sld [smem:[#allocation0]]
  $region49: #{m_linear_forward.1} parent=0
    _
  %s7 = ssub.s32 1, %s5
  %s8 = scalar_select 0, %s7, %s5
  loop: start=0, step=1, limit=10
  $region2: #{m_linear_forward.1} parent=0 // loop_pre_header
    _
  $region3: #{m_linear_forward.1} parent=0 // loop_header
    %s10 = sphi 0, %s14
    %p11 = scmp.ge.s32.totalorder %s10, 10
    %s20 = sphi 0, %s22
    %s23 = sphi 0, %s20
    %s24 = sphi 0, %s23
    %s40 = sphi 0, %s24
    %s44 = sphi 0, %s44
    %s46 = sphi 0, %s44
    %s47 = sphi 0, %s46
    %s61 = sphi 0, %s47
    %s65 = sphi 0, %s65
    %s67 = sphi 0, %s65
    %s68 = sphi 0, %s67
    %s82 = sphi 0, %s68
    %s86 = sphi 0, %s86
    %s88 = sphi 0, %s86
    %s89 = sphi 0, %s88
    %s103 = sphi 0, %s89
    %s109 = sphi 0, %s111
    %s112 = sphi 0, %s109
    %s113 = sphi 0, %s112
    %s129 = sphi 0, %s113
  $region4: #{m_linear_forward.1} parent=0 // loop_header_branch
    %13 = sbr.rel (%p11) target = $region8
  $region5: #{m_linear_forward.1} parent=0 // loop_body
    %s15 = ssub.s32 %s10, 1
    %s16 = ssub.s32 %s10, 2
    %s17 = sadd.s32 %s10, 1
    %s18 = ssub.s32 %s10, %s17
    %p19 = scmp.eq.s32.totalorder %s18, 0
    %s21 = sadd.s32 %s20, 1
    %s22 = scalar_select %p19, %s20, %s21
    %p25 = pneg %p19
    %p26 = scmp.eq.s32.totalorder %s10, 7
    %p27 = por %p25, %p26
    %p28 = scmp.ne.s32.totalorder %s20, %s23
    %p29 = scmp.eq.s32.totalorder %s10, 0
    %p30 = por %p28, %p29
    %p31 = scmp.ne.s32.totalorder %s20, %s23
    %p32 = scmp.eq.s32.totalorder %s15, 7
    %p33 = por %p31, %p32
    %p34 = scmp.ne.s32.totalorder %s23, %s24
    %p35 = scmp.eq.s32.totalorder %s15, 0
    %p36 = por %p34, %p35
    %p37 = scmp.ne.s32.totalorder %s23, %s24
    %p38 = scmp.eq.s32.totalorder %s16, 7
    %p39 = por %p37, %p38
    %p41 = scmp.ne.s32.totalorder %s24, %s40
    %p42 = scmp.eq.s32.totalorder %s16, 0
    %p43 = por %p41, %p42
    %s45 = sadd.s32 %s44, 1
    %p48 = scmp.eq.s32.totalorder %s10, 7
    %p49 = scmp.ne.s32.totalorder %s44, %s46
    %p50 = scmp.eq.s32.totalorder %s10, 0
    %p51 = por %p49, %p50
    %p52 = scmp.ne.s32.totalorder %s44, %s46
    %p53 = scmp.eq.s32.totalorder %s15, 7
    %p54 = por %p52, %p53
    %p55 = scmp.ne.s32.totalorder %s46, %s47
    %p56 = scmp.eq.s32.totalorder %s15, 0
    %p57 = por %p55, %p56
    %p58 = scmp.ne.s32.totalorder %s46, %s47
    %p59 = scmp.eq.s32.totalorder %s16, 7
    %p60 = por %p58, %p59
    %p62 = scmp.ne.s32.totalorder %s47, %s61
    %p63 = scmp.eq.s32.totalorder %s16, 0
    %p64 = por %p62, %p63
    %s66 = sadd.s32 %s65, 1
    %p69 = scmp.eq.s32.totalorder %s10, 7
    %p70 = scmp.ne.s32.totalorder %s65, %s67
    %p71 = scmp.eq.s32.totalorder %s10, 0
    %p72 = por %p70, %p71
    %p73 = scmp.ne.s32.totalorder %s65, %s67
    %p74 = scmp.eq.s32.totalorder %s15, 7
    %p75 = por %p73, %p74
    %p76 = scmp.ne.s32.totalorder %s67, %s68
    %p77 = scmp.eq.s32.totalorder %s15, 0
    %p78 = por %p76, %p77
    %p79 = scmp.ne.s32.totalorder %s67, %s68
    %p80 = scmp.eq.s32.totalorder %s16, 7
    %p81 = por %p79, %p80
    %p83 = scmp.ne.s32.totalorder %s68, %s82
    %p84 = scmp.eq.s32.totalorder %s16, 0
    %p85 = por %p83, %p84
    %s87 = sadd.s32 %s86, 1
    %p90 = scmp.eq.s32.totalorder %s10, 7
    %p91 = scmp.ne.s32.totalorder %s86, %s88
    %p92 = scmp.eq.s32.totalorder %s10, 0
    %p93 = por %p91, %p92
    %p94 = scmp.ne.s32.totalorder %s86, %s88
    %p95 = scmp.eq.s32.totalorder %s15, 7
    %p96 = por %p94, %p95
    %p97 = scmp.ne.s32.totalorder %s88, %s89
    %p98 = scmp.eq.s32.totalorder %s15, 0
    %p99 = por %p97, %p98
    %p100 = scmp.ne.s32.totalorder %s88, %s89
    %p101 = scmp.eq.s32.totalorder %s16, 7
    %p102 = por %p100, %p101
    %p104 = scmp.ne.s32.totalorder %s89, %s103
    %p105 = scmp.eq.s32.totalorder %s16, 0
    %p106 = por %p104, %p105
    %s107 = ssub.s32 %s10, %s17
    %p108 = scmp.eq.s32.totalorder %s107, 0
    %s110 = sadd.s32 %s109, 1
    %s111 = scalar_select %p108, %s109, %s110
    %p114 = pneg %p108
    %p115 = scmp.eq.s32.totalorder %s10, 7
    %p116 = por %p114, %p115
    %p117 = scmp.ne.s32.totalorder %s109, %s112
    %p118 = scmp.eq.s32.totalorder %s10, 0
    %p119 = por %p117, %p118
    %p120 = scmp.ne.s32.totalorder %s109, %s112
    %p121 = scmp.eq.s32.totalorder %s15, 7
    %p122 = por %p120, %p121
    %p123 = scmp.ne.s32.totalorder %s112, %s113
    %p124 = scmp.eq.s32.totalorder %s15, 0
    %p125 = por %p123, %p124
    %p126 = scmp.ne.s32.totalorder %s112, %s113
    %p127 = scmp.eq.s32.totalorder %s16, 7
    %p128 = por %p126, %p127
    %p130 = scmp.ne.s32.totalorder %s113, %s129
    %p131 = scmp.eq.s32.totalorder %s16, 0
    %p132 = por %p130, %p131
    %p133 = scmp.le.s32.totalorder 1, %s10
    %p134 = scmp.lt.s32.totalorder %s10, 9
    %p135 = pnand %p133, %p134
    %p136 = pneg %p135
    // Predicated region
    $region9: #{m_linear_forward.1} parent=5 // pred_check
      _
    $region10: #{m_linear_forward.1} parent=5 // pred_check_branch
      %138 = sbr.rel (%p135) target = $region12
    $region11: #{m_linear_forward.1} parent=5 // pred_region
      %s139 = ssub.s32 %s10, 1
      // Predicated region
      $region13: #{m_linear_forward.1} parent=11 // pred_check
        %p140 = pneg %p57
      $region14: #{m_linear_forward.1} parent=11 // pred_check_branch
        %142 = sbr.rel (%p140) target = $region16
      $region15: #{m_linear_forward.1} parent=11 // pred_region
        _
      $region16: #{m_linear_forward.1} parent=11 // pred_fallthru
        _
      // Predicated region
      $region17: #{m_linear_forward.1} parent=11 // pred_check
        %p143 = pneg %p78
      $region18: #{m_linear_forward.1} parent=11 // pred_check_branch
        %145 = sbr.rel (%p143) target = $region20
      $region19: #{m_linear_forward.1} parent=11 // pred_region
        _
      $region20: #{m_linear_forward.1} parent=11 // pred_fallthru
        _
      // Predicated region
      $region21: #{m_linear_forward.1} parent=11 // pred_check
        %p146 = pneg %p99
      $region22: #{m_linear_forward.1} parent=11 // pred_check_branch
        %148 = sbr.rel (%p146) target = $region24
      $region23: #{m_linear_forward.1} parent=11 // pred_region
        _
      $region24: #{m_linear_forward.1} parent=11 // pred_fallthru
        _
    $region12: #{m_linear_forward.1} parent=5 // pred_fallthru
      _
    %p149 = scmp.lt.s32.totalorder %s10, 8
    // Predicated region
    $region25: #{m_linear_forward.1} parent=5 // pred_check
      %p150 = pneg %p149
    $region26: #{m_linear_forward.1} parent=5 // pred_check_branch
      %152 = sbr.rel (%p150) target = $region28
    $region27: #{m_linear_forward.1} parent=5 // pred_region
      // Predicated region
      $region29: #{m_linear_forward.1} parent=27 // pred_check
        %p153 = pneg %p30
      $region30: #{m_linear_forward.1} parent=27 // pred_check_branch
        %155 = sbr.rel (%p153) target = $region32
      $region31: #{m_linear_forward.1} parent=27 // pred_region
        %p156 = scmp.lt.s32.totalorder %s10, 7
        %s157 = scalar_select %p156, %s10, 7
        %s158 = smul.addr %s157, 2
        %s159 = smul.addr %s158, 4
        %s160 = scalar_lea.vmem %s0, %s159
      $region32: #{m_linear_forward.1} parent=27 // pred_fallthru
        _
    $region28: #{m_linear_forward.1} parent=5 // pred_fallthru
      _
    %p161 = scmp.le.s32.totalorder 1, %s10
    %p162 = scmp.lt.s32.totalorder %s10, 9
    %p163 = pnand %p161, %p162
    %p164 = pneg %p163
    // Predicated region
    $region33: #{m_linear_forward.1} parent=5 // pred_check
      _
    $region34: #{m_linear_forward.1} parent=5 // pred_check_branch
      %166 = sbr.rel (%p163) target = $region36
    $region35: #{m_linear_forward.1} parent=5 // pred_region
      %s167 = ssub.s32 %s10, 1
      %p168 = scmp.lt.s32.totalorder %s15, 7
      %s169 = scalar_select %p168, %s15, 7
      %s170 = smul.addr %s169, 2
      %s171 = smul.addr %s170, 4
      %s172 = scalar_lea.vmem %s0, %s171
      %p173 = pneg %p36
      %p174 = pneg %p33
      %p175 = pneg %p57
      %p176 = pneg %p54
      %p177 = pneg %p78
      %p178 = pneg %p75
      %p179 = pneg %p99
      %p180 = pneg %p96
      %p181 = pneg %p125
      %p182 = pneg %p122
      %p183 = scmp.lt.s32.totalorder %s15, 7
      %s184 = scalar_select %p183, %s15, 7
      %s185 = smul.addr %s184, 4
      %s186 = scalar_lea.vmem %s4, %s185
      %p187 = scmp.lt.s32.totalorder %s15, 7
      %s188 = scalar_select %p187, %s15, 7
      %s189 = smul.addr %s188, 2
      %s190 = smul.addr %s189, 4
      %s191 = scalar_lea.vmem %s0, %s190
      %p192 = scmp.lt.s32.totalorder %s15, 7
      %s193 = scalar_select %p192, %s15, 7
      %s194 = smul.addr %s193, 4
      %s195 = scalar_lea.vmem %s4, %s194
      %v197 = vld [vmem:[%s191] sm:$0xf]
      %v198 = vld [vmem:[%s191 + $0x4] sm:$0xf]
      %v199 = vld [vmem:[%s1] sm:$0xf]
      %v200 = vld [vmem:[%s1 + $0x4] sm:$0xf]
      %v201 = vld [vmem:[%s3] sm:$0xf]
      %v202 = vld [vmem:[%s3 + $0x4] sm:$0xf]
      %v205 = vunpack.c.l.b16 %v199
      %v206 = vunpack.c.l.b16 %v200
      %v207 = vpack.c.b16 %v206, %v205
      %v210 = vunpack.c.l.b16 %v201
      %v211 = vunpack.c.l.b16 %v202
      %v212 = vpack.c.b16 %v211, %v210
      %vm214 = vcmask 130048
      %v216 = vsel %vm214, %v207, 0
      %218 = vmatpush.bf16.msra.mxu0 0
      %219 = vmatpush.bf16.msra.mxu0 0
      %220 = vmatpush.bf16.msra.mxu0 0
      %221 = vmatpush.bf16.msra.mxu0 0
      %222 = vmatpush.bf16.msra.mxu0 0
      %223 = vmatpush.bf16.msra.mxu0 0
      %224 = vmatpush.bf16.msra.mxu0 0
      %225 = vmatpush.bf16.msra.mxu0 %v212
      %226 = vmatmul.bf16.gmra.mxu0 %v216
      %v227 = vpop.f32.mrf.mxu0
      %v228 = vadd.f32 0.0, %v227
      %v229 = vpop.f32.mrf.mxu0
      %v230 = vadd.f32 0.0, %v229
      %231 = vdwg.mxu0
      %v232 = vld [vmem:[%s2] sm:$0x3]
      %v235 = vunpack.c.l.b16 %v197
      %v236 = vunpack.c.l.b16 %v198
      %v237 = vpack.c.b16 %v236, %v235
      %v240 = vsel %vm214, %v232, 0
      %242 = vmatpush.bf16.msra.mxu0 0
      %243 = vmatpush.bf16.msra.mxu0 0
      %244 = vmatpush.bf16.msra.mxu0 0
      %245 = vmatpush.bf16.msra.mxu0 0
      %246 = vmatpush.bf16.msra.mxu0 0
      %247 = vmatpush.bf16.msra.mxu0 0
      %248 = vmatpush.bf16.msra.mxu0 0
      %249 = vmatpush.bf16.msra.mxu0 %v237
      %250 = vmatmul.bf16.gmra.mxu0 %v240
      %v251 = vpop.f32.mrf.mxu0
      %v252 = vadd.f32 0.0, %v251
      %v253 = vpop.f32.mrf.mxu0
      %254 = vdwg.mxu0
      %v255 = vpack.c.bf16 %v252, %v252
      %v256 = vpack.c.bf16 %v230, %v228
      %vm257 = vcmask 121856
      %v259 = vsel %vm257, %v255, 0
      %vm261 = vcmask 1046528
      %vm262 = vcmask 1047552
      %v263 = vsel %vm261, 4294967295, 65535
      %v264 = vsel %vm262, %v263, 0
      %v266 = vand.u32 %v256, %v264
      %268 = vmatpush.bf16.msra.mxu0 0
      %269 = vmatpush.bf16.msra.mxu0 0
      %270 = vmatpush.bf16.msra.mxu0 0
      %271 = vmatpush.bf16.msra.mxu0 0
      %272 = vmatpush.bf16.msra.mxu0 0
      %273 = vmatpush.bf16.msra.mxu0 0
      %274 = vmatpush.bf16.msra.mxu0 0
      %275 = vmatpush.bf16.msra.mxu0 %v266
      %276 = vmatmul.bf16.gmra.mxu0 %v259
      %v277 = vpop.f32.mrf.mxu0
      %v278 = vadd.f32 0.0, %v277
      %v279 = vpop.f32.mrf.mxu0
      %280 = vdwg.mxu0
      %vm281 = vcmask 18432
      %282 = vst.msk [vmem:[%s195] sm:$0x7] %vm281, %v278
      %p283 = scmp.lt.s32.totalorder %s15, 7
      %s284 = scalar_select %p283, %s15, 7
      %s285 = smul.addr %s284, 4
      %s286 = scalar_lea.vmem %s4, %s285
      // Predicated region
      $region37: #{m_linear_forward.1} parent=35 // pred_check
        %p287 = pneg %p122
      $region38: #{m_linear_forward.1} parent=35 // pred_check_branch
        %289 = sbr.rel (%p287) target = $region40
      $region39: #{m_linear_forward.1} parent=35 // pred_region
        _
      $region40: #{m_linear_forward.1} parent=35 // pred_fallthru
        _
    $region36: #{m_linear_forward.1} parent=5 // pred_fallthru
      _
    %p290 = scmp.le.s32.totalorder 2, %s10
    // Predicated region
    $region41: #{m_linear_forward.1} parent=5 // pred_check
      %p291 = pneg %p290
    $region42: #{m_linear_forward.1} parent=5 // pred_check_branch
      %293 = sbr.rel (%p291) target = $region44
    $region43: #{m_linear_forward.1} parent=5 // pred_region
      %s294 = ssub.s32 %s10, 2
      // Predicated region
      $region45: #{m_linear_forward.1} parent=43 // pred_check
        %p295 = pneg %p128
      $region46: #{m_linear_forward.1} parent=43 // pred_check_branch
        %297 = sbr.rel (%p295) target = $region48
      $region47: #{m_linear_forward.1} parent=43 // pred_region
        %p298 = scmp.lt.s32.totalorder %s16, 7
        %s299 = scalar_select %p298, %s16, 7
        %s300 = smul.addr %s299, 4
        %s301 = scalar_lea.vmem %s4, %s300
      $region48: #{m_linear_forward.1} parent=43 // pred_fallthru
        _
    $region44: #{m_linear_forward.1} parent=5 // pred_fallthru
      _
  $region6: #{m_linear_forward.1} parent=0 // loop_footer
    %s14 = sadd.s32 1, %s10
  $region7: #{m_linear_forward.1} parent=0 // loop_footer_branch
    %9 = sbr.rel target = $region3
  $region8: #{m_linear_forward.1} parent=0 // loop_exit
    _

</llo_original>
